<compile_context>
chip_gen: v5e
topology: v5e:2x2
jax: 0.10.0
libtpu: 0.0.40
codegen_flags: <defaults>
</compile_context>

<pallas_src>
import jax
import jax.numpy as jnp
from jax.experimental import pallas as pl
from jax.experimental.pallas import tpu as pltpu

HEAD1_PAD = 128   # 4 heads x 16 = 64 hidden, padded to a full 128-lane matmul
OUT_PAD = 8       # 1 + 2 + 2 + 2 = 7 valid output columns, padded to 8 lanes


# ---------------------------------------------------------------------------
# Kernel
# ---------------------------------------------------------------------------
def model1_kernel(
    x_ref,                       # (TB, 8)   f32 input, column 7 == 1.0 (bias feature)
    w1_ref,                      # (8, 128)  bf16  [b1 folded into row 7]
    w2_ref, b2_ref,              # (128, 64) bf16, (1, 64) f32   [BN1 folded in]
    w3_ref, b3_ref,              # (64, 32)  bf16, (1, 32) f32   [BN2 folded in]
    wh1_ref, bh1_ref,            # (32, 128) bf16, (1, 128) f32  fused head layer-1
    wh2_ref, bh2_ref,            # (128, 8)  bf16, (1, 8)   f32  fused block-diag head layer-2
    out_ref,                     # (TB, 8)   f32 combined output
):
    x = x_ref[...].astype(jnp.bfloat16)

    # shared trunk: Linear -> ReLU (BN folded into next Linear, Dropout = id).
    # bf16 operands into the MXU, f32 accumulation / bias-add / ReLU.
    h = jnp.dot(x, w1_ref[...], preferred_element_type=jnp.float32)
    h = jnp.maximum(h, 0.0).astype(jnp.bfloat16)

    h = jnp.dot(h, w2_ref[...], preferred_element_type=jnp.float32) + b2_ref[...]
    h = jnp.maximum(h, 0.0).astype(jnp.bfloat16)

    h = jnp.dot(h, w3_ref[...], preferred_element_type=jnp.float32) + b3_ref[...]
    shared = jnp.maximum(h, 0.0).astype(jnp.bfloat16)

    # fused heads: one (TB,128) intermediate, one (TB,8) output matmul.
    hh = (jnp.dot(shared, wh1_ref[...], preferred_element_type=jnp.float32)
          + bh1_ref[...])
    hh = jnp.maximum(hh, 0.0).astype(jnp.bfloat16)

    # age-head trailing ReLU is applied in the wrapper on the sliced column.
    out_ref[...] = (jnp.dot(hh, wh2_ref[...], preferred_element_type=jnp.float32)
                    + bh2_ref[...])


# ---------------------------------------------------------------------------
# Parameter construction (PyTorch-style init) + algebraic fold/fuse
# ---------------------------------------------------------------------------
def init_linear(key, fan_in, fan_out):
    """PyTorch-style uniform init; weight returned as (in, out)."""
    kw, kb = jax.random.split(key)
    bound = float(fan_in) ** -0.5
    w = jax.random.uniform(kw, (fan_in, fan_out), jnp.float32, -bound, bound)
    b = jax.random.uniform(kb, (1, fan_out), jnp.float32, -bound, bound)
    return w, b


def init_batchnorm(dim, eps=1e-5):
    """Eval-mode BN with fresh running stats -> per-feature scale & shift."""
    gamma = jnp.ones((1, dim), jnp.float32)
    beta = jnp.zeros((1, dim), jnp.float32)
    running_mean = jnp.zeros((1, dim), jnp.float32)
    running_var = jnp.ones((1, dim), jnp.float32)
    scale = gamma / jnp.sqrt(running_var + eps)
    shift = beta - running_mean * scale
    return scale, shift


def make_raw_params(seed=0):
    key = jax.random.PRNGKey(seed)
    ks = jax.random.split(key, 11)
    p = {}
    p["w1"], p["b1"] = init_linear(ks[0], 7, 128)
    p["bn1_s"], p["bn1_t"] = init_batchnorm(128)
    p["w2"], p["b2"] = init_linear(ks[1], 128, 64)
    p["bn2_s"], p["bn2_t"] = init_batchnorm(64)
    p["w3"], p["b3"] = init_linear(ks[2], 64, 32)
    heads = []
    for i, out_dim in enumerate([1, 2, 2, 2]):      # age, gender, handedness, class
        hw1, hb1 = init_linear(ks[3 + 2 * i], 32, 16)
        hw2, hb2 = init_linear(ks[4 + 2 * i], 16, out_dim)
        heads.append((hw1, hb1, hw2, hb2))
    p["heads"] = heads
    return p


def fold_and_fuse(p):
    """Fold eval-mode BN into the next Linear, fuse the 4 heads, fold b1 into w1,
    cast weights to bf16 (biases stay f32 for accumulator-side adds)."""
    # b1 folded as an extra input feature (wrapper appends a 1.0 column): 7 -> 8.
    w1 = jnp.concatenate([p["w1"], p["b1"]], axis=0)                  # (8, 128)
    # BN1 -> Linear2:  W2' = diag(s1) @ W2 ;  b2' = t1 @ W2 + b2
    w2 = p["w2"] * p["bn1_s"].T
    b2 = p["b2"] + p["bn1_t"] @ p["w2"]
    # BN2 -> Linear3
    w3 = p["w3"] * p["bn2_s"].T
    b3 = p["b3"] + p["bn2_t"] @ p["w3"]

    # fused head layer-1: concat along output dim, pad 64 -> 128 lanes.
    hw1 = jnp.concatenate([h[0] for h in p["heads"]], axis=1)          # (32, 64)
    hb1 = jnp.concatenate([h[1] for h in p["heads"]], axis=1)          # (1, 64)
    hw1 = jnp.pad(hw1, ((0, 0), (0, HEAD1_PAD - hw1.shape[1])))
    hb1 = jnp.pad(hb1, ((0, 0), (0, HEAD1_PAD - hb1.shape[1])))

    # fused head layer-2: block-diagonal, columns [age:1|gender:2|hand:2|class:2|pad:1]
    wh2 = jnp.zeros((HEAD1_PAD, OUT_PAD), jnp.float32)
    bh2 = jnp.zeros((1, OUT_PAD), jnp.float32)
    col = 0
    for i, (_, _, hw2_i, hb2_i) in enumerate(p["heads"]):
        od = hw2_i.shape[1]
        wh2 = wh2.at[i * 16:(i + 1) * 16, col:col + od].set(hw2_i)
        bh2 = bh2.at[0, col:col + od].set(hb2_i[0])
        col += od

    bf = lambda a: a.astype(jnp.bfloat16)
    return (bf(w1), bf(w2), b2, bf(w3), b3, bf(hw1), hb1, bf(wh2), bh2)


# ---------------------------------------------------------------------------
# Wrapper
# ---------------------------------------------------------------------------
def _round_up(x, m):
    return ((x + m - 1) // m) * m


def model1_forward(x, packed, *, tb=1024):
    """x: (B, 7) float32 -> (age (B,1), gender (B,2), handedness (B,2), class (B,2))."""
    B = x.shape[0]
    x = x.astype(jnp.float32)
    x8 = jnp.concatenate([x, jnp.ones((B, 1), jnp.float32)], axis=1)   # bias feature

    # batch tile: multiple of 8 sublanes, no larger than the padded batch.
    tb = max(8, min(_round_up(int(tb), 8), _round_up(B, 8)))
    # Guarantee >= 2 grid steps when the batch allows it so the "parallel"
    # batch axis can shard across both v7x TensorCores (no-op on v5e/v6e).
    if B > 8 and _round_up(B, tb) // tb < 2:
        tb = max(8, _round_up((B + 1) // 2, 8))
    Bp = _round_up(B, tb)
    if Bp != B:
        x8 = jnp.pad(x8, ((0, Bp - B), (0, 0)))

    # NOTE: weight BlockSpecs use a constant block index, so they are DMA'd
    # once and stay VMEM-resident across the batch grid.
    out = pl.pallas_call(
        model1_kernel,
        out_shape=jax.ShapeDtypeStruct((Bp, OUT_PAD), jnp.float32),
        grid=(Bp // tb,),
        in_specs=[pl.BlockSpec((tb, 8), lambda i: (i, 0))]
                 + [pl.BlockSpec(w.shape, lambda i: (0, 0)) for w in packed],
        out_specs=pl.BlockSpec((tb, OUT_PAD), lambda i: (i, 0)),
        compiler_params=pltpu.CompilerParams(
            dimension_semantics=("parallel",)),
    )(x8, *packed)

    age = jnp.maximum(out[:B, 0:1], 0.0)      # age head has a trailing ReLU
    gender = out[:B, 1:3]
    handedness = out[:B, 3:5]
    class_out = out[:B, 5:7]
    return age, gender, handedness, class_out


def reference_forward(x, p):
    """Pure-JAX f32 eval-mode reference (unfused, BN applied explicitly)."""
    h = jnp.maximum(x @ p["w1"] + p["b1"], 0.0)
    h = h * p["bn1_s"] + p["bn1_t"]
    h = jnp.maximum(h @ p["w2"] + p["b2"], 0.0)
    h = h * p["bn2_s"] + p["bn2_t"]
    shared = jnp.maximum(h @ p["w3"] + p["b3"], 0.0)
    outs = []
    for i, (hw1, hb1, hw2, hb2) in enumerate(p["heads"]):
        a = jnp.maximum(shared @ hw1 + hb1, 0.0)
        o = a @ hw2 + hb2
        if i == 0:                       # age head has trailing ReLU
            o = jnp.maximum(o, 0.0)
        outs.append(o)
    return tuple(outs)


if __name__ == "__main__":
    B = 8
    key = jax.random.PRNGKey(0)
    x = jax.random.normal(key, (B, 7), jnp.float32)

    raw = make_raw_params(seed=0)
    packed = fold_and_fuse(raw)

    outs = jax.block_until_ready(model1_forward(x, packed))
    age, gender, handedness, class_out = outs

    assert age.shape == (B, 1)
    assert gender.shape == (B, 2)
    assert handedness.shape == (B, 2)
    assert class_out.shape == (B, 2)

    # sanity check against the unfused pure-JAX f32 reference (bf16 chain,
    # f32 accumulation -> comfortably within 2e-2 at these magnitudes)
    refs = reference_forward(x, raw)
    for got, ref in zip(outs, refs):
        err = float(jnp.max(jnp.abs(got - ref)))
        assert err < 2e-2, f"mismatch vs reference: {err}"

    print("KERNEL_OK")
</pallas_src>

<mosaic_0001>
module attributes {stable_mosaic.version = 11 : i64} {
  func.func @model1_kernel(%arg0: i32, %arg1: memref<8x8xf32, #tpu.memory_space<vmem>>, %arg2: memref<8x128xbf16, #tpu.memory_space<vmem>>, %arg3: memref<128x64xbf16, #tpu.memory_space<vmem>>, %arg4: memref<1x64xf32, #tpu.memory_space<vmem>>, %arg5: memref<64x32xbf16, #tpu.memory_space<vmem>>, %arg6: memref<1x32xf32, #tpu.memory_space<vmem>>, %arg7: memref<32x128xbf16, #tpu.memory_space<vmem>>, %arg8: memref<1x128xf32, #tpu.memory_space<vmem>>, %arg9: memref<128x8xbf16, #tpu.memory_space<vmem>>, %arg10: memref<1x8xf32, #tpu.memory_space<vmem>>, %arg11: memref<8x8xf32, #tpu.memory_space<vmem>>) attributes {dimension_semantics = [#tpu.dimension_semantics<parallel>], iteration_bounds = array<i64: 1>, scalar_prefetch = 0 : i64, scratch_operands = 0 : i64, tpu.core_type = #tpu.core_type<tc>, window_params = [{transform_indices = @transform_0, window_bounds = array<i64: 8, 8>}, {pipeline_mode = #tpu.pipeline_mode<synchronous>, transform_indices = @transform_1, window_bounds = array<i64: 8, 128>}, {pipeline_mode = #tpu.pipeline_mode<synchronous>, transform_indices = @transform_2, window_bounds = array<i64: 128, 64>}, {pipeline_mode = #tpu.pipeline_mode<synchronous>, transform_indices = @transform_3, window_bounds = array<i64: 1, 64>}, {pipeline_mode = #tpu.pipeline_mode<synchronous>, transform_indices = @transform_4, window_bounds = array<i64: 64, 32>}, {pipeline_mode = #tpu.pipeline_mode<synchronous>, transform_indices = @transform_5, window_bounds = array<i64: 1, 32>}, {pipeline_mode = #tpu.pipeline_mode<synchronous>, transform_indices = @transform_6, window_bounds = array<i64: 32, 128>}, {pipeline_mode = #tpu.pipeline_mode<synchronous>, transform_indices = @transform_7, window_bounds = array<i64: 1, 128>}, {pipeline_mode = #tpu.pipeline_mode<synchronous>, transform_indices = @transform_8, window_bounds = array<i64: 128, 8>}, {pipeline_mode = #tpu.pipeline_mode<synchronous>, transform_indices = @transform_9, window_bounds = array<i64: 1, 8>}, {transform_indices = @transform_10, window_bounds = array<i64: 8, 8>}]} {
    %c0 = arith.constant 0 : index
    %c0_0 = arith.constant 0 : index
    %0 = vector.load %arg1[%c0, %c0_0] : memref<8x8xf32, #tpu.memory_space<vmem>>, vector<8x8xf32>
    %1 = arith.truncf %0 : vector<8x8xf32> to vector<8x8xbf16>
    %c0_1 = arith.constant 0 : index
    %c0_2 = arith.constant 0 : index
    %2 = vector.load %arg2[%c0_1, %c0_2] : memref<8x128xbf16, #tpu.memory_space<vmem>>, vector<8x128xbf16>
    %cst = arith.constant dense<0.000000e+00> : vector<8x128xf32>
    %3 = tpu.matmul %1, %2, %cst {dimension_numbers = #tpu.dot_dimension_numbers<[1], [0], [0], [1], [0, 0, 1, 1], [], []>} : vector<8x8xbf16>, vector<8x128xbf16>, vector<8x128xf32> -> vector<8x128xf32>
    %cst_3 = arith.constant 0.000000e+00 : f32
    %4 = vector.broadcast %cst_3 : f32 to vector<8x128xf32>
    %5 = arith.maximumf %3, %4 : vector<8x128xf32>
    %6 = arith.truncf %5 : vector<8x128xf32> to vector<8x128xbf16>
    %c0_4 = arith.constant 0 : index
    %c0_5 = arith.constant 0 : index
    %7 = vector.load %arg3[%c0_4, %c0_5] : memref<128x64xbf16, #tpu.memory_space<vmem>>, vector<128x64xbf16>
    %cst_6 = arith.constant dense<0.000000e+00> : vector<8x64xf32>
    %8 = tpu.matmul %6, %7, %cst_6 {dimension_numbers = #tpu.dot_dimension_numbers<[1], [0], [0], [1], [0, 0, 1, 1], [], []>} : vector<8x128xbf16>, vector<128x64xbf16>, vector<8x64xf32> -> vector<8x64xf32>
    %c0_7 = arith.constant 0 : index
    %c0_8 = arith.constant 0 : index
    %9 = vector.load %arg4[%c0_7, %c0_8] : memref<1x64xf32, #tpu.memory_space<vmem>>, vector<1x64xf32>
    %10 = vector.broadcast %9 : vector<1x64xf32> to vector<8x64xf32>
    %11 = arith.addf %8, %10 : vector<8x64xf32>
    %cst_9 = arith.constant 0.000000e+00 : f32
    %12 = vector.broadcast %cst_9 : f32 to vector<8x64xf32>
    %13 = arith.maximumf %11, %12 : vector<8x64xf32>
    %14 = arith.truncf %13 : vector<8x64xf32> to vector<8x64xbf16>
    %c0_10 = arith.constant 0 : index
    %c0_11 = arith.constant 0 : index
    %15 = vector.load %arg5[%c0_10, %c0_11] : memref<64x32xbf16, #tpu.memory_space<vmem>>, vector<64x32xbf16>
    %cst_12 = arith.constant dense<0.000000e+00> : vector<8x32xf32>
    %16 = tpu.matmul %14, %15, %cst_12 {dimension_numbers = #tpu.dot_dimension_numbers<[1], [0], [0], [1], [0, 0, 1, 1], [], []>} : vector<8x64xbf16>, vector<64x32xbf16>, vector<8x32xf32> -> vector<8x32xf32>
    %c0_13 = arith.constant 0 : index
    %c0_14 = arith.constant 0 : index
    %17 = vector.load %arg6[%c0_13, %c0_14] : memref<1x32xf32, #tpu.memory_space<vmem>>, vector<1x32xf32>
    %18 = vector.broadcast %17 : vector<1x32xf32> to vector<8x32xf32>
    %19 = arith.addf %16, %18 : vector<8x32xf32>
    %cst_15 = arith.constant 0.000000e+00 : f32
    %20 = vector.broadcast %cst_15 : f32 to vector<8x32xf32>
    %21 = arith.maximumf %19, %20 : vector<8x32xf32>
    %22 = arith.truncf %21 : vector<8x32xf32> to vector<8x32xbf16>
    %c0_16 = arith.constant 0 : index
    %c0_17 = arith.constant 0 : index
    %23 = vector.load %arg7[%c0_16, %c0_17] : memref<32x128xbf16, #tpu.memory_space<vmem>>, vector<32x128xbf16>
    %cst_18 = arith.constant dense<0.000000e+00> : vector<8x128xf32>
    %24 = tpu.matmul %22, %23, %cst_18 {dimension_numbers = #tpu.dot_dimension_numbers<[1], [0], [0], [1], [0, 0, 1, 1], [], []>} : vector<8x32xbf16>, vector<32x128xbf16>, vector<8x128xf32> -> vector<8x128xf32>
    %c0_19 = arith.constant 0 : index
    %c0_20 = arith.constant 0 : index
    %25 = vector.load %arg8[%c0_19, %c0_20] : memref<1x128xf32, #tpu.memory_space<vmem>>, vector<1x128xf32>
    %26 = vector.broadcast %25 : vector<1x128xf32> to vector<8x128xf32>
    %27 = arith.addf %24, %26 : vector<8x128xf32>
    %cst_21 = arith.constant 0.000000e+00 : f32
    %28 = vector.broadcast %cst_21 : f32 to vector<8x128xf32>
    %29 = arith.maximumf %27, %28 : vector<8x128xf32>
    %30 = arith.truncf %29 : vector<8x128xf32> to vector<8x128xbf16>
    %c0_22 = arith.constant 0 : index
    %c0_23 = arith.constant 0 : index
    %31 = vector.load %arg9[%c0_22, %c0_23] : memref<128x8xbf16, #tpu.memory_space<vmem>>, vector<128x8xbf16>
    %cst_24 = arith.constant dense<0.000000e+00> : vector<8x8xf32>
    %32 = tpu.matmul %30, %31, %cst_24 {dimension_numbers = #tpu.dot_dimension_numbers<[1], [0], [0], [1], [0, 0, 1, 1], [], []>} : vector<8x128xbf16>, vector<128x8xbf16>, vector<8x8xf32> -> vector<8x8xf32>
    %c0_25 = arith.constant 0 : index
    %c0_26 = arith.constant 0 : index
    %33 = vector.load %arg10[%c0_25, %c0_26] : memref<1x8xf32, #tpu.memory_space<vmem>>, vector<1x8xf32>
    %34 = vector.broadcast %33 : vector<1x8xf32> to vector<8x8xf32>
    %35 = arith.addf %32, %34 : vector<8x8xf32>
    %c0_27 = arith.constant 0 : index
    %c0_28 = arith.constant 0 : index
    %36 = vector.load %arg11[%c0_27, %c0_28] : memref<8x8xf32, #tpu.memory_space<vmem>>, vector<8x8xf32>
    tpu.vector_store %arg11[%c0_27, %c0_28], %35 {strides = array<i32>} : memref<8x8xf32, #tpu.memory_space<vmem>>, vector<8x8xf32>,
    return
  }
  func.func @transform_0(%arg0: i32) -> (i32, i32) {
    %c0_i32 = arith.constant 0 : i32
    %c0_i32_0 = arith.constant 0 : i32
    return %arg0, %c0_i32 : i32, i32
  }
  func.func @transform_1(%arg0: i32) -> (i32, i32) {
    %c0_i32 = arith.constant 0 : i32
    %c0_i32_0 = arith.constant 0 : i32
    %c0_i32_1 = arith.constant 0 : i32
    return %c0_i32, %c0_i32_0 : i32, i32
  }
  func.func @transform_2(%arg0: i32) -> (i32, i32) {
    %c0_i32 = arith.constant 0 : i32
    %c0_i32_0 = arith.constant 0 : i32
    %c0_i32_1 = arith.constant 0 : i32
    return %c0_i32, %c0_i32_0 : i32, i32
  }
  func.func @transform_3(%arg0: i32) -> (i32, i32) {
    %c0_i32 = arith.constant 0 : i32
    %c0_i32_0 = arith.constant 0 : i32
    %c0_i32_1 = arith.constant 0 : i32
    return %c0_i32, %c0_i32_0 : i32, i32
  }
  func.func @transform_4(%arg0: i32) -> (i32, i32) {
    %c0_i32 = arith.constant 0 : i32
    %c0_i32_0 = arith.constant 0 : i32
    %c0_i32_1 = arith.constant 0 : i32
    return %c0_i32, %c0_i32_0 : i32, i32
  }
  func.func @transform_5(%arg0: i32) -> (i32, i32) {
    %c0_i32 = arith.constant 0 : i32
    %c0_i32_0 = arith.constant 0 : i32
    %c0_i32_1 = arith.constant 0 : i32
    return %c0_i32, %c0_i32_0 : i32, i32
  }
  func.func @transform_6(%arg0: i32) -> (i32, i32) {
    %c0_i32 = arith.constant 0 : i32
    %c0_i32_0 = arith.constant 0 : i32
    %c0_i32_1 = arith.constant 0 : i32
    return %c0_i32, %c0_i32_0 : i32, i32
  }
  func.func @transform_7(%arg0: i32) -> (i32, i32) {
    %c0_i32 = arith.constant 0 : i32
    %c0_i32_0 = arith.constant 0 : i32
    %c0_i32_1 = arith.constant 0 : i32
    return %c0_i32, %c0_i32_0 : i32, i32
  }
  func.func @transform_8(%arg0: i32) -> (i32, i32) {
    %c0_i32 = arith.constant 0 : i32
    %c0_i32_0 = arith.constant 0 : i32
    %c0_i32_1 = arith.constant 0 : i32
    return %c0_i32, %c0_i32_0 : i32, i32
  }
  func.func @transform_9(%arg0: i32) -> (i32, i32) {
    %c0_i32 = arith.constant 0 : i32
    %c0_i32_0 = arith.constant 0 : i32
    %c0_i32_1 = arith.constant 0 : i32
    return %c0_i32, %c0_i32_0 : i32, i32
  }
  func.func @transform_10(%arg0: i32) -> (i32, i32) {
    %c0_i32 = arith.constant 0 : i32
    %c0_i32_0 = arith.constant 0 : i32
    return %arg0, %c0_i32 : i32, i32
  }
}

</mosaic_0001>

<llo_original>
// kernel: tpu_custom_call.1
$region0: #{tpu_custom_call.1}
  #allocation0 [shape = 'u32[]', space=smem, size = 0x4, offset = 0x4, fixed_abs, tag = 'smem constant byte address 0x4 - core index']
  #allocation1 [shape = 'u32[72,128]{1,0:T(1,128)}', space=vmem, size = 0x9000, scoped, tag = 'internal scratch']
  %s0 = inlined_call_operand.vmem [shape: f32[8,8], index: 0, kind: input, shape index: {}]
  %s1 = inlined_call_operand.vmem [shape: bf16[8,128], index: 1, kind: input, shape index: {}]
  %s2 = inlined_call_operand.vmem [shape: bf16[128,64], index: 2, kind: input, shape index: {}]
  %s3 = inlined_call_operand.vmem [shape: f32[1,64], index: 3, kind: input, shape index: {}]
  %s4 = inlined_call_operand.vmem [shape: bf16[64,32], index: 4, kind: input, shape index: {}]
  %s5 = inlined_call_operand.vmem [shape: f32[1,32], index: 5, kind: input, shape index: {}]
  %s6 = inlined_call_operand.vmem [shape: bf16[32,128], index: 6, kind: input, shape index: {}]
  %s7 = inlined_call_operand.vmem [shape: f32[1,128], index: 7, kind: input, shape index: {}]
  %s8 = inlined_call_operand.vmem [shape: bf16[128,8], index: 8, kind: input, shape index: {}]
  %s9 = inlined_call_operand.vmem [shape: f32[1,8], index: 9, kind: input, shape index: {}]
  %s10 = inlined_call_operand.hbm [shape: f32[8,8], index: 10, kind: output, shape index: {}]
  %s11 = sld [smem:[#allocation0]]
  $region50: #{tpu_custom_call.1} parent=0
    _
  %s13 = ssub.s32 1, %s11
  %s14 = scalar_select 0, %s13, %s11
  $region1: #{tpu_custom_call.1} parent=0
    #allocation2 [shape = 'u8[4096]{0}', space=vmem, size = 0x1000, scoped, tag = 'output window, operand 0, single buffered']
    #allocation3 [shape = 's32[1]{0}', space=sflag, size = 0x4, scoped, tag = 'scoped memory for tpu_custom_call.1']
    %15 = vsyncpa [#allocation3], 0
    // Predicated region
    $region2: #{tpu_custom_call.1} parent=1 // pred_check
      _
    $region3: #{tpu_custom_call.1} parent=1 // pred_check_branch
      %17 = sbr.rel (0) target = $region5
    $region4: #{tpu_custom_call.1} parent=1 // pred_region
      _
    $region5: #{tpu_custom_call.1} parent=1 // pred_fallthru
      _
    // Predicated region
    $region6: #{tpu_custom_call.1} parent=1 // pred_check
      _
    $region7: #{tpu_custom_call.1} parent=1 // pred_check_branch
      %19 = sbr.rel (0) target = $region9
    $region8: #{tpu_custom_call.1} parent=1 // pred_region
      _
    $region9: #{tpu_custom_call.1} parent=1 // pred_fallthru
      _
    // Predicated region
    $region10: #{tpu_custom_call.1} parent=1 // pred_check
      _
    $region11: #{tpu_custom_call.1} parent=1 // pred_check_branch
      %21 = sbr.rel (0) target = $region13
    $region12: #{tpu_custom_call.1} parent=1 // pred_region
      _
    $region13: #{tpu_custom_call.1} parent=1 // pred_fallthru
      _
    // Predicated region
    $region14: #{tpu_custom_call.1} parent=1 // pred_check
      _
    $region15: #{tpu_custom_call.1} parent=1 // pred_check_branch
      %23 = sbr.rel (0) target = $region17
    $region16: #{tpu_custom_call.1} parent=1 // pred_region
      _
    $region17: #{tpu_custom_call.1} parent=1 // pred_fallthru
      _
    // Predicated region
    $region18: #{tpu_custom_call.1} parent=1 // pred_check
      _
    $region19: #{tpu_custom_call.1} parent=1 // pred_check_branch
      %25 = sbr.rel (0) target = $region21
    $region20: #{tpu_custom_call.1} parent=1 // pred_region
      _
    $region21: #{tpu_custom_call.1} parent=1 // pred_fallthru
      _
    // Predicated region
    $region22: #{tpu_custom_call.1} parent=1 // pred_check
      _
    $region23: #{tpu_custom_call.1} parent=1 // pred_check_branch
      %27 = sbr.rel (0) target = $region25
    $region24: #{tpu_custom_call.1} parent=1 // pred_region
      _
    $region25: #{tpu_custom_call.1} parent=1 // pred_fallthru
      _
    // Predicated region
    $region26: #{tpu_custom_call.1} parent=1 // pred_check
      _
    $region27: #{tpu_custom_call.1} parent=1 // pred_check_branch
      %29 = sbr.rel (0) target = $region29
    $region28: #{tpu_custom_call.1} parent=1 // pred_region
      _
    $region29: #{tpu_custom_call.1} parent=1 // pred_fallthru
      _
    // Predicated region
    $region30: #{tpu_custom_call.1} parent=1 // pred_check
      _
    $region31: #{tpu_custom_call.1} parent=1 // pred_check_branch
      %31 = sbr.rel (0) target = $region33
    $region32: #{tpu_custom_call.1} parent=1 // pred_region
      _
    $region33: #{tpu_custom_call.1} parent=1 // pred_fallthru
      _
    // Predicated region
    $region34: #{tpu_custom_call.1} parent=1 // pred_check
      _
    $region35: #{tpu_custom_call.1} parent=1 // pred_check_branch
      %33 = sbr.rel (0) target = $region37
    $region36: #{tpu_custom_call.1} parent=1 // pred_region
      _
    $region37: #{tpu_custom_call.1} parent=1 // pred_fallthru
      _
    // Predicated region
    $region38: #{tpu_custom_call.1} parent=1 // pred_check
      _
    $region39: #{tpu_custom_call.1} parent=1 // pred_check_branch
      %35 = sbr.rel (0) target = $region41
    $region40: #{tpu_custom_call.1} parent=1 // pred_region
      _
    $region41: #{tpu_custom_call.1} parent=1 // pred_fallthru
      _
    %v37 = vld [vmem:[%s0] sm:$0xff]
    %v38 = vpack.c.bf16 %v37, %v37
    %v39 = vld [vmem:[%s1] sm:$0xf]
    %vm40 = vcmask 64512
    %v42 = vsel %vm40, %v38, 0
    %vm44 = vcmask 1043456
    %v46 = vsel %vm44, %v39, 0
    %48 = vmatpush.bf16.msra.mxu0 0
    %49 = vmatpush.bf16.msra.mxu0 0
    %50 = vmatpush.bf16.msra.mxu0 0
    %51 = vmatpush.bf16.msra.mxu0 0
    %52 = vmatpush.bf16.msra.mxu0 0
    %53 = vmatpush.bf16.msra.mxu0 0
    %54 = vmatpush.bf16.msra.mxu0 0
    %55 = vmatpush.bf16.msra.mxu0 %v46
    %56 = vmatmul.bf16.gmra.mxu0 %v42
    %v57 = vpop.f32.mrf.mxu0
    %v58 = vadd.f32 0.0, %v57
    %v59 = vpop.f32.mrf.mxu0
    %60 = vdwg.mxu0
    %v61 = vmax.f32 %v58, 0.0
    %v62 = vpack.c.bf16 %v61, %v61
    %v63 = vld [vmem:[%s2] sm:$0xf]
    %v64 = vld [vmem:[%s2 + $0x4] sm:$0xf]
    %v65 = vld [vmem:[%s2 + $0x8] sm:$0xf]
    %v66 = vld [vmem:[%s2 + $0xc] sm:$0xf]
    %v67 = vld [vmem:[%s2 + $0x10] sm:$0xf]
    %v68 = vld [vmem:[%s2 + $0x14] sm:$0xf]
    %v69 = vld [vmem:[%s2 + $0x18] sm:$0xf]
    %v70 = vld [vmem:[%s2 + $0x1c] sm:$0xf]
    %v71 = vld [vmem:[%s2 + $0x20] sm:$0xf]
    %v72 = vld [vmem:[%s2 + $0x24] sm:$0xf]
    %v73 = vld [vmem:[%s2 + $0x28] sm:$0xf]
    %v74 = vld [vmem:[%s2 + $0x2c] sm:$0xf]
    %v75 = vld [vmem:[%s2 + $0x30] sm:$0xf]
    %v76 = vld [vmem:[%s2 + $0x34] sm:$0xf]
    %v77 = vld [vmem:[%s2 + $0x38] sm:$0xf]
    %v78 = vld [vmem:[%s2 + $0x3c] sm:$0xf]
    %v79 = vld [vmem:[%s3] sm:$0x1]
    %v81 = vperm.slane %v79, 0
    %v99 = vunpack.c.l.b16 %v63
    %v100 = vunpack.c.l.b16 %v64
    %v101 = vunpack.c.l.b16 %v65
    %v102 = vunpack.c.l.b16 %v66
    %v103 = vunpack.c.l.b16 %v67
    %v104 = vunpack.c.l.b16 %v68
    %v105 = vunpack.c.l.b16 %v69
    %v106 = vunpack.c.l.b16 %v70
    %v107 = vunpack.c.l.b16 %v71
    %v108 = vunpack.c.l.b16 %v72
    %v109 = vunpack.c.l.b16 %v73
    %v110 = vunpack.c.l.b16 %v74
    %v111 = vunpack.c.l.b16 %v75
    %v112 = vunpack.c.l.b16 %v76
    %v113 = vunpack.c.l.b16 %v77
    %v114 = vunpack.c.l.b16 %v78
    %v115 = vpack.c.b16 %v100, %v99
    %v116 = vpack.c.b16 %v102, %v101
    %v117 = vpack.c.b16 %v104, %v103
    %v118 = vpack.c.b16 %v106, %v105
    %v119 = vpack.c.b16 %v108, %v107
    %v120 = vpack.c.b16 %v110, %v109
    %v121 = vpack.c.b16 %v112, %v111
    %v122 = vpack.c.b16 %v114, %v113
    %131 = vmatpush.bf16.msra.mxu0 %v122
    %132 = vmatpush.bf16.msra.mxu0 %v121
    %133 = vmatpush.bf16.msra.mxu0 %v120
    %134 = vmatpush.bf16.msra.mxu0 %v119
    %135 = vmatpush.bf16.msra.mxu0 %v118
    %136 = vmatpush.bf16.msra.mxu0 %v117
    %137 = vmatpush.bf16.msra.mxu0 %v116
    %138 = vmatpush.bf16.msra.mxu0 %v115
    %139 = vmatmul.bf16.gmra.mxu0 %v62
    %v140 = vpop.f32.mrf.mxu0
    %v141 = vadd.f32 %v81, %v140
    %v142 = vpop.f32.mrf.mxu0
    %143 = vdwg.mxu0
    %v144 = vmax.f32 %v141, 0.0
    %v145 = vpack.c.bf16 %v144, %v144
    %v146 = vld [vmem:[%s4] sm:$0xf]
    %v147 = vld [vmem:[%s4 + $0x4] sm:$0xf]
    %v148 = vld [vmem:[%s4 + $0x8] sm:$0xf]
    %v149 = vld [vmem:[%s4 + $0xc] sm:$0xf]
    %v150 = vld [vmem:[%s4 + $0x10] sm:$0xf]
    %v151 = vld [vmem:[%s4 + $0x14] sm:$0xf]
    %v152 = vld [vmem:[%s4 + $0x18] sm:$0xf]
    %v153 = vld [vmem:[%s4 + $0x1c] sm:$0xf]
    %v154 = vld [vmem:[%s5] sm:$0x1]
    %v156 = vperm.slane %v154, 0
    %v166 = vunpack.c.l.b16 %v146
    %v167 = vunpack.c.l.b16 %v147
    %v168 = vunpack.c.l.b16 %v148
    %v169 = vunpack.c.l.b16 %v149
    %v170 = vunpack.c.l.b16 %v150
    %v171 = vunpack.c.l.b16 %v151
    %v172 = vunpack.c.l.b16 %v152
    %v173 = vunpack.c.l.b16 %v153
    %v174 = vpack.c.b16 %v167, %v166
    %v175 = vpack.c.b16 %v169, %v168
    %v176 = vpack.c.b16 %v171, %v170
    %v177 = vpack.c.b16 %v173, %v172
    %vm182 = vcmask 523264
    %v184 = vsel %vm182, %v145, 0
    %186 = vmatpush.bf16.msra.mxu0 0
    %187 = vmatpush.bf16.msra.mxu0 0
    %188 = vmatpush.bf16.msra.mxu0 0
    %189 = vmatpush.bf16.msra.mxu0 0
    %190 = vmatpush.bf16.msra.mxu0 %v177
    %191 = vmatpush.bf16.msra.mxu0 %v176
    %192 = vmatpush.bf16.msra.mxu0 %v175
    %193 = vmatpush.bf16.msra.mxu0 %v174
    %194 = vmatmul.bf16.gmra.mxu0 %v184
    %v195 = vpop.f32.mrf.mxu0
    %v196 = vadd.f32 %v156, %v195
    %v197 = vpop.f32.mrf.mxu0
    %198 = vdwg.mxu0
    %v199 = vmax.f32 %v196, 0.0
    %v200 = vpack.c.bf16 %v199, %v199
    %v201 = vld [vmem:[%s6] sm:$0xf]
    %v202 = vld [vmem:[%s6 + $0x4] sm:$0xf]
    %v203 = vld [vmem:[%s6 + $0x8] sm:$0xf]
    %v204 = vld [vmem:[%s6 + $0xc] sm:$0xf]
    %v205 = vld [vmem:[%s7] sm:$0x1]
    %v207 = vperm.slane %v205, 0
    %v213 = vunpack.c.l.b16 %v201
    %v214 = vunpack.c.l.b16 %v202
    %v215 = vunpack.c.l.b16 %v203
    %v216 = vunpack.c.l.b16 %v204
    %v217 = vpack.c.b16 %v214, %v213
    %v218 = vpack.c.b16 %v216, %v215
    %vm221 = vcmask 261120
    %v223 = vsel %vm221, %v200, 0
    %225 = vmatpush.bf16.msra.mxu0 0
    %226 = vmatpush.bf16.msra.mxu0 0
    %227 = vmatpush.bf16.msra.mxu0 0
    %228 = vmatpush.bf16.msra.mxu0 0
    %229 = vmatpush.bf16.msra.mxu0 0
    %230 = vmatpush.bf16.msra.mxu0 0
    %231 = vmatpush.bf16.msra.mxu0 %v218
    %232 = vmatpush.bf16.msra.mxu0 %v217
    %233 = vmatmul.bf16.gmra.mxu0 %v223
    %v234 = vpop.f32.mrf.mxu0
    %v235 = vadd.f32 %v207, %v234
    %v236 = vpop.f32.mrf.mxu0
    %237 = vdwg.mxu0
    %v238 = vmax.f32 %v235, 0.0
    %v239 = vpack.c.bf16 %v238, %v238
    %v240 = vld [vmem:[%s8] sm:$0xf]
    %v241 = vld [vmem:[%s8 + $0x4] sm:$0xf]
    %v242 = vld [vmem:[%s8 + $0x8] sm:$0xf]
    %v243 = vld [vmem:[%s8 + $0xc] sm:$0xf]
    %v244 = vld [vmem:[%s8 + $0x10] sm:$0xf]
    %v245 = vld [vmem:[%s8 + $0x14] sm:$0xf]
    %v246 = vld [vmem:[%s8 + $0x18] sm:$0xf]
    %v247 = vld [vmem:[%s8 + $0x1c] sm:$0xf]
    %v248 = vld [vmem:[%s8 + $0x20] sm:$0xf]
    %v249 = vld [vmem:[%s8 + $0x24] sm:$0xf]
    %v250 = vld [vmem:[%s8 + $0x28] sm:$0xf]
    %v251 = vld [vmem:[%s8 + $0x2c] sm:$0xf]
    %v252 = vld [vmem:[%s8 + $0x30] sm:$0xf]
    %v253 = vld [vmem:[%s8 + $0x34] sm:$0xf]
    %v254 = vld [vmem:[%s8 + $0x38] sm:$0xf]
    %v255 = vld [vmem:[%s8 + $0x3c] sm:$0xf]
    %v256 = vld [vmem:[%s9] sm:$0x1]
    %v258 = vperm.slane %v256, 0
    %v276 = vunpack.c.l.b16 %v240
    %v277 = vunpack.c.l.b16 %v241
    %v278 = vunpack.c.l.b16 %v242
    %v279 = vunpack.c.l.b16 %v243
    %v280 = vunpack.c.l.b16 %v244
    %v281 = vunpack.c.l.b16 %v245
    %v282 = vunpack.c.l.b16 %v246
    %v283 = vunpack.c.l.b16 %v247
    %v284 = vunpack.c.l.b16 %v248
    %v285 = vunpack.c.l.b16 %v249
    %v286 = vunpack.c.l.b16 %v250
    %v287 = vunpack.c.l.b16 %v251
    %v288 = vunpack.c.l.b16 %v252
    %v289 = vunpack.c.l.b16 %v253
    %v290 = vunpack.c.l.b16 %v254
    %v291 = vunpack.c.l.b16 %v255
    %v292 = vpack.c.b16 %v277, %v276
    %v293 = vpack.c.b16 %v279, %v278
    %v294 = vpack.c.b16 %v281, %v280
    %v295 = vpack.c.b16 %v283, %v282
    %v296 = vpack.c.b16 %v285, %v284
    %v297 = vpack.c.b16 %v287, %v286
    %v298 = vpack.c.b16 %v289, %v288
    %v299 = vpack.c.b16 %v291, %v290
    %308 = vmatpush.bf16.msra.mxu0 %v299
    %309 = vmatpush.bf16.msra.mxu0 %v298
    %310 = vmatpush.bf16.msra.mxu0 %v297
    %311 = vmatpush.bf16.msra.mxu0 %v296
    %312 = vmatpush.bf16.msra.mxu0 %v295
    %313 = vmatpush.bf16.msra.mxu0 %v294
    %314 = vmatpush.bf16.msra.mxu0 %v293
    %315 = vmatpush.bf16.msra.mxu0 %v292
    %316 = vmatmul.bf16.gmra.mxu0 %v239
    %v317 = vpop.f32.mrf.mxu0
    %v318 = vadd.f32 %v258, %v317
    %v319 = vpop.f32.mrf.mxu0
    %320 = vdwg.mxu0
    %321 = vst.msk [vmem:[#allocation2] sm:$0xff] %vm40, %v318
    // Predicated region
    $region42: #{tpu_custom_call.1} parent=1 // pred_check
      _
    $region43: #{tpu_custom_call.1} parent=1 // pred_check_branch
      %323 = sbr.rel (0) target = $region45
    $region44: #{tpu_custom_call.1} parent=1 // pred_region
      %325 = vsyncadd [#allocation3], 0
      %s327 = sshll.u32 [#allocation2], 4
      %s328 = int_to_ptr.vmem [resolvable:$true] %s327
      %s329 = sshll.u32 %s10, 4
      %s330 = int_to_ptr.hbm [resolvable:$true] %s329
      %332 = dma.vmem_to_hbm [thread:$0]  %s328, 128, %s330, [#allocation3]
    $region45: #{tpu_custom_call.1} parent=1 // pred_fallthru
      _
    // Predicated region
    $region46: #{tpu_custom_call.1} parent=1 // pred_check
      _
    $region47: #{tpu_custom_call.1} parent=1 // pred_check_branch
      %334 = sbr.rel (0) target = $region49
    $region48: #{tpu_custom_call.1} parent=1 // pred_region
      %336 = dma.done [#allocation3], 128
    $region49: #{tpu_custom_call.1} parent=1 // pred_fallthru
      _
    %337 = vsyncpa [#allocation3], 1

</llo_original>
